<compile_context>
chip_gen: v7x
topology: tpu7x:2x2x1
jax: 0.10.0
libtpu: 0.0.40
codegen_flags: <defaults>
</compile_context>

<pallas_src>
import numpy as np
import jax
import jax.numpy as jnp
from jax.experimental import pallas as pl
from jax.experimental.pallas import tpu as pltpu

LANES = 128


def _vmem():
    return pl.BlockSpec(memory_space=pltpu.MemorySpace.VMEM)


# ---------------------------------------------------------------------------
# Kernel 1: computer()  (dense embedding layers + 1-layer LightGCN, cached)
# ---------------------------------------------------------------------------
def dcl_computer_kernel(wu_ref, wi_ref, Wu_ref, bu_ref, Wi_ref, bi_ref,
                        guu_ref, gui_ref, giu_ref, gii_ref,
                        lu_ref, li_ref):
    f32 = jnp.float32
    mx = guu_ref.dtype                       # MXU operand dtype (bf16 or f32)

    users = jnp.dot(wu_ref[...], Wu_ref[...], preferred_element_type=f32) \
        + bu_ref[...]                                                  # (NU, E)
    items = jnp.dot(wi_ref[...], Wi_ref[...], preferred_element_type=f32) \
        + bi_ref[...]                                                  # (NI, E)

    u_mx = users.astype(mx)
    i_mx = items.astype(mx)

    # Row+column-split graph: no concat, no sublane slices, no (N,E) slab.
    all1_u = (jnp.dot(guu_ref[...], u_mx, preferred_element_type=f32) +
              jnp.dot(gui_ref[...], i_mx, preferred_element_type=f32))  # (NU,E)
    all1_i = (jnp.dot(giu_ref[...], u_mx, preferred_element_type=f32) +
              jnp.dot(gii_ref[...], i_mx, preferred_element_type=f32))  # (NI,E)

    lu_ref[...] = 0.5 * (users + all1_u)
    li_ref[...] = 0.5 * (items + all1_i)


# ---------------------------------------------------------------------------
# Kernel 2: per-row gather (scalar-prefetch index_map) + fused scoring head
# ---------------------------------------------------------------------------
def dcl_score_kernel(uid_ref, iid_ref,            # scalar-prefetch (unused in body)
                     lu_ref, li_ref, w2_ref, bias_ref, out_ref):
    del uid_ref, iid_ref
    mf = lu_ref[0] * li_ref[0]                                         # (1, E)
    # col 0 = infer = mf.sum(1);  col 1 = (mf @ Wp + bp).sum(1) collapsed.
    out_ref[0] = (jnp.dot(mf, w2_ref[...], preferred_element_type=jnp.float32)
                  + bias_ref[...])                                     # (1, 128)


# ---------------------------------------------------------------------------
# Wrapper-side parameter prep (done once)
# ---------------------------------------------------------------------------
def prepare_params(w_user, w_item, Wu, bu, Wi, bi, Wp, bp, graph, num_users,
                   mxu_dtype=jnp.bfloat16):
    nu = num_users
    ni = graph.shape[0] - nu
    e = Wu.shape[1]

    # Row+column split of the normalized adjacency.
    g_uu = graph[:nu, :nu]
    g_ui = graph[:nu, nu:]
    g_iu = graph[nu:, :nu]
    g_ii = graph[nu:, nu:]

    # Pad the item-feature contraction dim (15) to a 128-lane multiple.
    kf = w_item.shape[1]
    kp = ((kf + LANES - 1) // LANES) * LANES
    w_item_p = jnp.pad(w_item, ((0, 0), (0, kp - kf)))
    Wi_p = jnp.pad(Wi, ((0, kp - kf), (0, 0)))

    # Fused scoring head: out_row = mf @ W2 + bias_row (lane-dense slab).
    w2 = jnp.zeros((e, LANES), jnp.float32)
    w2 = w2.at[:, 0].set(1.0)                      # infer = mf.sum(1)
    w2 = w2.at[:, 1].set(jnp.sum(Wp, axis=1))      # collapsed price head
    bias_row = jnp.zeros((1, LANES), jnp.float32).at[0, 1].set(jnp.sum(bp))

    cast = lambda x: x.astype(mxu_dtype)
    return dict(
        w_user=cast(w_user), w_item=cast(w_item_p),
        Wu=cast(Wu), bu=bu.astype(jnp.float32),
        Wi=cast(Wi_p), bi=bi.astype(jnp.float32),
        g_uu=cast(g_uu), g_ui=cast(g_ui), g_iu=cast(g_iu), g_ii=cast(g_ii),
        w2=w2, bias_row=bias_row,
        num_users=nu, num_items=ni, emb=e, item_feat_pad=kp)


# ---------------------------------------------------------------------------
# computer(): one pallas_call, result cached by the caller across batches
# ---------------------------------------------------------------------------
def dcl_computer(prep):
    nu, ni, e, kp = prep["num_users"], prep["num_items"], prep["emb"], prep["item_feat_pad"]

    flops = 2 * e * (nu * nu + ni * kp + nu * nu + nu * ni + ni * nu + ni * ni) \
        + 6 * (nu + ni) * e
    bytes_accessed = 4 * (nu * nu + ni * kp + nu * e + kp * e + 2 * e
                          + (nu + ni) * (nu + ni) + 2 * (nu + ni) * e)

    light_u, light_i = pl.pallas_call(
        dcl_computer_kernel,
        out_shape=(jax.ShapeDtypeStruct((nu, e), jnp.float32),
                   jax.ShapeDtypeStruct((ni, e), jnp.float32)),
        in_specs=[_vmem()] * 10,
        out_specs=(_vmem(), _vmem()),
        compiler_params=pltpu.CompilerParams(vmem_limit_bytes=32 * 1024 * 1024),
        cost_estimate=pl.CostEstimate(flops=int(flops), transcendentals=0,
                                      bytes_accessed=int(bytes_accessed)),
    )(prep["w_user"], prep["w_item"], prep["Wu"], prep["bu"],
      prep["Wi"], prep["bi"],
      prep["g_uu"], prep["g_ui"], prep["g_iu"], prep["g_ii"])

    # (N, 1, E) views so the scoring kernel can gather (1, 1, E) row blocks
    # with layout-clean last-two dims for ANY NU/NI.
    return light_u.reshape(nu, 1, e), light_i.reshape(ni, 1, e)


# ---------------------------------------------------------------------------
# forward() scoring path: indexed gather + fused MF / price head
# ---------------------------------------------------------------------------
def dcl_forward(prep, light_u3, light_i3, u_id, i_id):
    e = prep["emb"]
    b = u_id.shape[0]
    b_pad = max(8, ((b + 7) // 8) * 8)

    uid = jnp.zeros((b_pad,), jnp.int32).at[:b].set(u_id.astype(jnp.int32))
    iid = jnp.zeros((b_pad,), jnp.int32).at[:b].set(i_id.astype(jnp.int32))

    grid_spec = pltpu.PrefetchScalarGridSpec(
        num_scalar_prefetch=2,
        grid=(b_pad,),
        in_specs=[
            # data-dependent row gather driven by the SMEM-prefetched ids
            pl.BlockSpec((1, 1, e), lambda i, u, it: (u[i], 0, 0)),
            pl.BlockSpec((1, 1, e), lambda i, u, it: (it[i], 0, 0)),
            pl.BlockSpec((e, LANES), lambda i, u, it: (0, 0)),
            pl.BlockSpec((1, LANES), lambda i, u, it: (0, 0)),
        ],
        out_specs=pl.BlockSpec((1, 1, LANES), lambda i, u, it: (i, 0, 0)),
    )

    flops = b_pad * (e + 2 * e * LANES)
    bytes_accessed = 4 * (b_pad * (2 * e + LANES) + e * LANES + LANES + 2 * b_pad)

    out = pl.pallas_call(
        dcl_score_kernel,
        out_shape=jax.ShapeDtypeStruct((b_pad, 1, LANES), jnp.float32),
        grid_spec=grid_spec,
        compiler_params=pltpu.CompilerParams(
            dimension_semantics=("parallel",),
            vmem_limit_bytes=16 * 1024 * 1024),
        cost_estimate=pl.CostEstimate(flops=int(flops), transcendentals=0,
                                      bytes_accessed=int(bytes_accessed)),
    )(uid, iid, light_u3, light_i3, prep["w2"], prep["bias_row"])

    infer = out[:b, 0, 0]
    infer_price = out[:b, 0, 1]
    return infer, infer_price, []


# ---------------------------------------------------------------------------
# Glue: normalized adjacency (dense version of generate_adj_mat_single)
# ---------------------------------------------------------------------------
def build_norm_adj(R, num_users, num_items):
    n = num_users + num_items
    adj = np.zeros((n, n), dtype=np.float32)
    adj[:num_users, num_users:] = R
    adj[num_users:, :num_users] = R.T
    rowsum = adj.sum(axis=1)
    with np.errstate(divide="ignore"):
        d_inv = np.power(rowsum, -0.5)
    d_inv[np.isinf(d_inv)] = 0.0
    return (d_inv[:, None] * adj) * d_inv[None, :]


if __name__ == "__main__":
    # small synthetic shapes consistent with the module (dataset='ebay')
    num_users = 16
    num_items = 8
    emb = 128           # embedding_size
    item_feat = 15      # ebay item feature dim
    batch = 8
    alpha = 0.3

    key = jax.random.PRNGKey(0)
    ks = jax.random.split(key, 10)

    w_user = jax.random.normal(ks[0], (num_users, num_users), jnp.float32)
    w_item = jax.random.normal(ks[1], (num_items, item_feat), jnp.float32)
    R_buy = np.array(jax.random.bernoulli(ks[2], 0.3, (num_users, num_items)),
                     dtype=np.float32)
    R_bid = np.array(jax.random.bernoulli(ks[3], 0.3, (num_users, num_items)),
                     dtype=np.float32)

    # Graph = norm(A_buy) + alpha * norm(A_bid)
    graph = jnp.asarray(build_norm_adj(R_buy, num_users, num_items)
                        + alpha * build_norm_adj(R_bid, num_users, num_items),
                        dtype=jnp.float32)

    # parameters (nn.Linear weights pre-transposed to (in, out); zero biases)
    Wu = 0.01 * jax.random.normal(ks[4], (num_users, emb), jnp.float32)
    bu = jnp.zeros((1, emb), jnp.float32)
    Wi = 0.01 * jax.random.normal(ks[5], (item_feat, emb), jnp.float32)
    bi = jnp.zeros((1, emb), jnp.float32)
    Wp = 0.01 * jax.random.normal(ks[6], (emb, 5), jnp.float32)
    bp = jnp.zeros((1, 5), jnp.float32)

    u_id = jax.random.randint(ks[7], (batch,), 0, num_users)
    i_id = jax.random.randint(ks[8], (batch,), 0, num_items)

    # pure-JAX f32 reference (original, unfused math)
    users_emb = w_user @ Wu + bu
    items_emb = w_item @ Wi + bi
    all0 = jnp.concatenate([users_emb, items_emb], axis=0)
    light = 0.5 * (all0 + graph @ all0)
    U_ref, I_ref = light[:num_users][u_id], light[num_users:][i_id]
    mf_ref = U_ref * I_ref
    infer_ref = mf_ref.sum(1)
    price_ref = (mf_ref @ Wp + bp).sum(1)

    # (a) f32 MXU operands: bit-faithful path, tight tolerance
    prep32 = prepare_params(w_user, w_item, Wu, bu, Wi, bi, Wp, bp, graph,
                            num_users, mxu_dtype=jnp.float32)
    lu32, li32 = dcl_computer(prep32)                 # cached across batches
    infer32, price32, ilcl = dcl_forward(prep32, lu32, li32, u_id, i_id)
    jax.block_until_ready((infer32, price32))
    assert jnp.allclose(infer32, infer_ref, atol=1e-4), "infer mismatch (f32)"
    assert jnp.allclose(price32, price_ref, atol=1e-4), "inferPrice mismatch (f32)"

    # (b) bf16 MXU operands, f32 accumulation (v6e/v7x recommendation)
    prep16 = prepare_params(w_user, w_item, Wu, bu, Wi, bi, Wp, bp, graph,
                            num_users, mxu_dtype=jnp.bfloat16)
    lu16, li16 = dcl_computer(prep16)
    infer16, price16, _ = dcl_forward(prep16, lu16, li16, u_id, i_id)
    jax.block_until_ready((infer16, price16))
    assert jnp.allclose(infer16, infer_ref, atol=5e-3, rtol=5e-2), \
        "infer mismatch (bf16)"
    assert jnp.allclose(price16, price_ref, atol=5e-3, rtol=5e-2), \
        "inferPrice mismatch (bf16)"

    print("KERNEL_OK")
</pallas_src>

<mosaic_0001>
module attributes {stable_mosaic.version = 11 : i64} {
  func.func @dcl_computer_kernel(%arg0: memref<16x16xf32, #tpu.memory_space<vmem>>, %arg1: memref<8x128xf32, #tpu.memory_space<vmem>>, %arg2: memref<16x128xf32, #tpu.memory_space<vmem>>, %arg3: memref<1x128xf32, #tpu.memory_space<vmem>>, %arg4: memref<128x128xf32, #tpu.memory_space<vmem>>, %arg5: memref<1x128xf32, #tpu.memory_space<vmem>>, %arg6: memref<16x16xf32, #tpu.memory_space<vmem>>, %arg7: memref<16x8xf32, #tpu.memory_space<vmem>>, %arg8: memref<8x16xf32, #tpu.memory_space<vmem>>, %arg9: memref<8x8xf32, #tpu.memory_space<vmem>>, %arg10: memref<16x128xf32, #tpu.memory_space<vmem>>, %arg11: memref<8x128xf32, #tpu.memory_space<vmem>>) attributes {dimension_semantics = [], scalar_prefetch = 0 : i64, scratch_operands = 0 : i64, tpu.core_type = #tpu.core_type<tc>} {
    %c0 = arith.constant 0 : index
    %c0_0 = arith.constant 0 : index
    %0 = vector.load %arg0[%c0, %c0_0] : memref<16x16xf32, #tpu.memory_space<vmem>>, vector<16x16xf32>
    %c0_1 = arith.constant 0 : index
    %c0_2 = arith.constant 0 : index
    %1 = vector.load %arg2[%c0_1, %c0_2] : memref<16x128xf32, #tpu.memory_space<vmem>>, vector<16x128xf32>
    %cst = arith.constant dense<0.000000e+00> : vector<16x128xf32>
    %2 = tpu.matmul %0, %1, %cst {dimension_numbers = #tpu.dot_dimension_numbers<[1], [0], [0], [1], [0, 0, 1, 1], [], []>} : vector<16x16xf32>, vector<16x128xf32>, vector<16x128xf32> -> vector<16x128xf32>
    %c0_3 = arith.constant 0 : index
    %c0_4 = arith.constant 0 : index
    %3 = vector.load %arg3[%c0_3, %c0_4] : memref<1x128xf32, #tpu.memory_space<vmem>>, vector<1x128xf32>
    %4 = vector.broadcast %3 : vector<1x128xf32> to vector<16x128xf32>
    %5 = arith.addf %2, %4 : vector<16x128xf32>
    %c0_5 = arith.constant 0 : index
    %c0_6 = arith.constant 0 : index
    %6 = vector.load %arg1[%c0_5, %c0_6] : memref<8x128xf32, #tpu.memory_space<vmem>>, vector<8x128xf32>
    %c0_7 = arith.constant 0 : index
    %c0_8 = arith.constant 0 : index
    %7 = vector.load %arg4[%c0_7, %c0_8] : memref<128x128xf32, #tpu.memory_space<vmem>>, vector<128x128xf32>
    %cst_9 = arith.constant dense<0.000000e+00> : vector<8x128xf32>
    %8 = tpu.matmul %6, %7, %cst_9 {dimension_numbers = #tpu.dot_dimension_numbers<[1], [0], [0], [1], [0, 0, 1, 1], [], []>} : vector<8x128xf32>, vector<128x128xf32>, vector<8x128xf32> -> vector<8x128xf32>
    %c0_10 = arith.constant 0 : index
    %c0_11 = arith.constant 0 : index
    %9 = vector.load %arg5[%c0_10, %c0_11] : memref<1x128xf32, #tpu.memory_space<vmem>>, vector<1x128xf32>
    %10 = vector.broadcast %9 : vector<1x128xf32> to vector<8x128xf32>
    %11 = arith.addf %8, %10 : vector<8x128xf32>
    %c0_12 = arith.constant 0 : index
    %c0_13 = arith.constant 0 : index
    %12 = vector.load %arg6[%c0_12, %c0_13] : memref<16x16xf32, #tpu.memory_space<vmem>>, vector<16x16xf32>
    %cst_14 = arith.constant dense<0.000000e+00> : vector<16x128xf32>
    %13 = tpu.matmul %12, %5, %cst_14 {dimension_numbers = #tpu.dot_dimension_numbers<[1], [0], [0], [1], [0, 0, 1, 1], [], []>} : vector<16x16xf32>, vector<16x128xf32>, vector<16x128xf32> -> vector<16x128xf32>
    %c0_15 = arith.constant 0 : index
    %c0_16 = arith.constant 0 : index
    %14 = vector.load %arg7[%c0_15, %c0_16] : memref<16x8xf32, #tpu.memory_space<vmem>>, vector<16x8xf32>
    %cst_17 = arith.constant dense<0.000000e+00> : vector<16x128xf32>
    %15 = tpu.matmul %14, %11, %cst_17 {dimension_numbers = #tpu.dot_dimension_numbers<[1], [0], [0], [1], [0, 0, 1, 1], [], []>} : vector<16x8xf32>, vector<8x128xf32>, vector<16x128xf32> -> vector<16x128xf32>
    %16 = arith.addf %13, %15 : vector<16x128xf32>
    %c0_18 = arith.constant 0 : index
    %c0_19 = arith.constant 0 : index
    %17 = vector.load %arg8[%c0_18, %c0_19] : memref<8x16xf32, #tpu.memory_space<vmem>>, vector<8x16xf32>
    %cst_20 = arith.constant dense<0.000000e+00> : vector<8x128xf32>
    %18 = tpu.matmul %17, %5, %cst_20 {dimension_numbers = #tpu.dot_dimension_numbers<[1], [0], [0], [1], [0, 0, 1, 1], [], []>} : vector<8x16xf32>, vector<16x128xf32>, vector<8x128xf32> -> vector<8x128xf32>
    %c0_21 = arith.constant 0 : index
    %c0_22 = arith.constant 0 : index
    %19 = vector.load %arg9[%c0_21, %c0_22] : memref<8x8xf32, #tpu.memory_space<vmem>>, vector<8x8xf32>
    %cst_23 = arith.constant dense<0.000000e+00> : vector<8x128xf32>
    %20 = tpu.matmul %19, %11, %cst_23 {dimension_numbers = #tpu.dot_dimension_numbers<[1], [0], [0], [1], [0, 0, 1, 1], [], []>} : vector<8x8xf32>, vector<8x128xf32>, vector<8x128xf32> -> vector<8x128xf32>
    %21 = arith.addf %18, %20 : vector<8x128xf32>
    %22 = arith.addf %5, %16 : vector<16x128xf32>
    %cst_24 = arith.constant 5.000000e-01 : f32
    %23 = vector.broadcast %cst_24 : f32 to vector<16x128xf32>
    %24 = arith.mulf %23, %22 : vector<16x128xf32>
    %c0_25 = arith.constant 0 : index
    %c0_26 = arith.constant 0 : index
    %25 = vector.load %arg10[%c0_25, %c0_26] : memref<16x128xf32, #tpu.memory_space<vmem>>, vector<16x128xf32>
    tpu.vector_store %arg10[%c0_25, %c0_26], %24 {strides = array<i32>} : memref<16x128xf32, #tpu.memory_space<vmem>>, vector<16x128xf32>,
    %26 = arith.addf %11, %21 : vector<8x128xf32>
    %cst_27 = arith.constant 5.000000e-01 : f32
    %27 = vector.broadcast %cst_27 : f32 to vector<8x128xf32>
    %28 = arith.mulf %27, %26 : vector<8x128xf32>
    %c0_28 = arith.constant 0 : index
    %c0_29 = arith.constant 0 : index
    %29 = vector.load %arg11[%c0_28, %c0_29] : memref<8x128xf32, #tpu.memory_space<vmem>>, vector<8x128xf32>
    tpu.vector_store %arg11[%c0_28, %c0_29], %28 {strides = array<i32>} : memref<8x128xf32, #tpu.memory_space<vmem>>, vector<8x128xf32>,
    return
  }
}

</mosaic_0001>

<llo_original>
// kernel: tpu_custom_call.1
$region0: #{tpu_custom_call.1}
  #allocation0 [shape = 'u32[]', space=smem, size = 0x4, offset = 0x4, fixed_abs, tag = 'smem constant byte address 0x4 - core index']
  #allocation1 [shape = 'u32[144,128]{1,0:T(1,128)}', space=vmem, size = 0x12000, scoped, tag = 'internal scratch']
  %s0 = inlined_call_operand.vmem [shape: f32[16,16], index: 0, kind: input, shape index: {}]
  %s1 = inlined_call_operand.hbm [shape: f32[8,128], index: 1, kind: input, shape index: {}]
  %s2 = inlined_call_operand.hbm [shape: f32[16,128], index: 2, kind: input, shape index: {}]
  %s3 = inlined_call_operand.vmem [shape: f32[1,128], index: 3, kind: input, shape index: {}]
  %s4 = inlined_call_operand.hbm [shape: f32[128,128], index: 4, kind: input, shape index: {}]
  %s5 = inlined_call_operand.vmem [shape: f32[1,128], index: 5, kind: input, shape index: {}]
  %s6 = inlined_call_operand.vmem [shape: f32[16,16], index: 6, kind: input, shape index: {}]
  %s7 = inlined_call_operand.vmem [shape: f32[16,8], index: 7, kind: input, shape index: {}]
  %s8 = inlined_call_operand.vmem [shape: f32[8,16], index: 8, kind: input, shape index: {}]
  %s9 = inlined_call_operand.vmem [shape: f32[8,8], index: 9, kind: input, shape index: {}]
  %s10 = inlined_call_operand.hbm [shape: f32[16,128], index: 10, kind: output, shape index: {0}]
  %s11 = inlined_call_operand.hbm [shape: f32[8,128], index: 11, kind: output, shape index: {1}]
  %12 = xla_tuple %s10, %s11
  %s13 = sld [smem:[#allocation0]]
  $region70: #{tpu_custom_call.1} parent=0
    _
  %s15 = ssub.s32 1, %s13
  %s16 = scalar_select 0, %s15, %s13
  $region1: #{tpu_custom_call.1} parent=0
    #allocation2 [shape = 'u8[4096]{0}', space=vmem, size = 0x1000, scoped, tag = 'input window, operand 1, single buffered']
    #allocation3 [shape = 's32[1]{0}', space=sflag, size = 0x4, scoped, tag = 'scoped memory for tpu_custom_call.1']
    #allocation4 [shape = 's32[1]{0}', space=sflag, size = 0x4, scoped, tag = 'scoped memory for tpu_custom_call.1']
    #allocation5 [shape = 'u8[8192]{0}', space=vmem, size = 0x2000, scoped, tag = 'input window, operand 2, single buffered']
    #allocation6 [shape = 's32[1]{0}', space=sflag, size = 0x4, scoped, tag = 'scoped memory for tpu_custom_call.1']
    #allocation7 [shape = 'u8[65536]{0}', space=vmem, size = 0x10000, scoped, tag = 'input window, operand 4, single buffered']
    #allocation8 [shape = 'u8[8192]{0}', space=vmem, size = 0x2000, scoped, tag = 'output window, operand 0, single buffered']
    #allocation9 [shape = 'u8[4096]{0}', space=vmem, size = 0x1000, scoped, tag = 'output window, operand 1, single buffered']
    #allocation10 [shape = 's32[1]{0}', space=sflag, size = 0x4, scoped, tag = 'scoped memory for tpu_custom_call.1']
    %17 = vsyncpa [#allocation3], 0
    %18 = vsyncpa [#allocation6], 0
    %19 = vsyncpa [#allocation4], 0
    %20 = vsyncpa [#allocation10], 0
    // Predicated region
    $region2: #{tpu_custom_call.1} parent=1 // pred_check
      _
    $region3: #{tpu_custom_call.1} parent=1 // pred_check_branch
      %22 = sbr.rel (0) target = $region5
    $region4: #{tpu_custom_call.1} parent=1 // pred_region
      _
    $region5: #{tpu_custom_call.1} parent=1 // pred_fallthru
      _
    // Predicated region
    $region6: #{tpu_custom_call.1} parent=1 // pred_check
      _
    $region7: #{tpu_custom_call.1} parent=1 // pred_check_branch
      %24 = sbr.rel (0) target = $region9
    $region8: #{tpu_custom_call.1} parent=1 // pred_region
      %s26 = ssub.s32 128, 128
      %27 = vsyncadd [#allocation3], %s26
      %s29 = sshll.u32 [#allocation2], 4
      %s30 = int_to_ptr.vmem [resolvable:$true] %s29
      %32 = dma.hbm_to_vmem [thread:$0]  %s1, 128, %s30, [#allocation3]
    $region9: #{tpu_custom_call.1} parent=1 // pred_fallthru
      _
    // Predicated region
    $region10: #{tpu_custom_call.1} parent=1 // pred_check
      _
    $region11: #{tpu_custom_call.1} parent=1 // pred_check_branch
      %34 = sbr.rel (0) target = $region13
    $region12: #{tpu_custom_call.1} parent=1 // pred_region
      %s36 = ssub.s32 256, 256
      %37 = vsyncadd [#allocation6], %s36
      %s38 = sshll.u32 [#allocation5], 4
      %s39 = int_to_ptr.vmem [resolvable:$true] %s38
      %44 = dma.hbm_to_vmem [thread:$0]  %s2, 256, %s39, [#allocation6], 128, 128, 8
    $region13: #{tpu_custom_call.1} parent=1 // pred_fallthru
      _
    // Predicated region
    $region14: #{tpu_custom_call.1} parent=1 // pred_check
      _
    $region15: #{tpu_custom_call.1} parent=1 // pred_check_branch
      %46 = sbr.rel (0) target = $region17
    $region16: #{tpu_custom_call.1} parent=1 // pred_region
      _
    $region17: #{tpu_custom_call.1} parent=1 // pred_fallthru
      _
    // Predicated region
    $region18: #{tpu_custom_call.1} parent=1 // pred_check
      _
    $region19: #{tpu_custom_call.1} parent=1 // pred_check_branch
      %48 = sbr.rel (0) target = $region21
    $region20: #{tpu_custom_call.1} parent=1 // pred_region
      %s50 = ssub.s32 2048, 2048
      %51 = vsyncadd [#allocation6], %s50
      %s52 = sshll.u32 [#allocation7], 4
      %s53 = int_to_ptr.vmem [resolvable:$true] %s52
      %58 = dma.hbm_to_vmem [thread:$0]  %s4, 2048, %s53, [#allocation6], 128, 128, 8
    $region21: #{tpu_custom_call.1} parent=1 // pred_fallthru
      _
    // Predicated region
    $region22: #{tpu_custom_call.1} parent=1 // pred_check
      _
    $region23: #{tpu_custom_call.1} parent=1 // pred_check_branch
      %60 = sbr.rel (0) target = $region25
    $region24: #{tpu_custom_call.1} parent=1 // pred_region
      _
    $region25: #{tpu_custom_call.1} parent=1 // pred_fallthru
      _
    // Predicated region
    $region26: #{tpu_custom_call.1} parent=1 // pred_check
      _
    $region27: #{tpu_custom_call.1} parent=1 // pred_check_branch
      %62 = sbr.rel (0) target = $region29
    $region28: #{tpu_custom_call.1} parent=1 // pred_region
      _
    $region29: #{tpu_custom_call.1} parent=1 // pred_fallthru
      _
    // Predicated region
    $region30: #{tpu_custom_call.1} parent=1 // pred_check
      _
    $region31: #{tpu_custom_call.1} parent=1 // pred_check_branch
      %64 = sbr.rel (0) target = $region33
    $region32: #{tpu_custom_call.1} parent=1 // pred_region
      _
    $region33: #{tpu_custom_call.1} parent=1 // pred_fallthru
      _
    // Predicated region
    $region34: #{tpu_custom_call.1} parent=1 // pred_check
      _
    $region35: #{tpu_custom_call.1} parent=1 // pred_check_branch
      %66 = sbr.rel (0) target = $region37
    $region36: #{tpu_custom_call.1} parent=1 // pred_region
      _
    $region37: #{tpu_custom_call.1} parent=1 // pred_fallthru
      _
    // Predicated region
    $region38: #{tpu_custom_call.1} parent=1 // pred_check
      _
    $region39: #{tpu_custom_call.1} parent=1 // pred_check_branch
      %68 = sbr.rel (0) target = $region41
    $region40: #{tpu_custom_call.1} parent=1 // pred_region
      _
    $region41: #{tpu_custom_call.1} parent=1 // pred_fallthru
      _
    // Predicated region
    $region42: #{tpu_custom_call.1} parent=1 // pred_check
      _
    $region43: #{tpu_custom_call.1} parent=1 // pred_check_branch
      %70 = sbr.rel (0) target = $region45
    $region44: #{tpu_custom_call.1} parent=1 // pred_region
      %71 = dma.done [#allocation3], 128
    $region45: #{tpu_custom_call.1} parent=1 // pred_fallthru
      _
    // Predicated region
    $region46: #{tpu_custom_call.1} parent=1 // pred_check
      _
    $region47: #{tpu_custom_call.1} parent=1 // pred_check_branch
      %73 = sbr.rel (0) target = $region49
    $region48: #{tpu_custom_call.1} parent=1 // pred_region
      %74 = dma.done [#allocation6], 256
    $region49: #{tpu_custom_call.1} parent=1 // pred_fallthru
      _
    // Predicated region
    $region50: #{tpu_custom_call.1} parent=1 // pred_check
      _
    $region51: #{tpu_custom_call.1} parent=1 // pred_check_branch
      %76 = sbr.rel (0) target = $region53
    $region52: #{tpu_custom_call.1} parent=1 // pred_region
      %77 = dma.done [#allocation6], 2048
    $region53: #{tpu_custom_call.1} parent=1 // pred_fallthru
      _
    %v78 = vld [vmem:[%s0] sm:$0xff]
    %v79 = vld [vmem:[%s0 + $0x8] sm:$0xff]
    %v80 = vld [vmem:[#allocation5] sm:$0xff]
    %v81 = vld [vmem:[#allocation5 + $0x8] sm:$0xff]
    %v82 = vld [vmem:[%s3] sm:$0x1]
    %v84 = vlaneseq
    %v85 = vshrl.u32 %v84, 7
    %v86 = vsub.s32 0, %v85
    %v87 = vrot.slane %v82, %v86
    %vm89 = vcmask 130048
    %v91 = vsel %vm89, %v78, 0
    %v94 = vsel %vm89, %v79, 0
    %96 = vmatprep.subr.mxu0 0.0
    %97 = vmatpush1.msra.mxu0 %v80
    %98 = vmatprep.subr.mxu0 0.0
    %99 = vmatpush1.msra.mxu0 %v81
    %100 = vmatprep.subr.mxu0 0.0
    %101 = vmatpush1.msra.mxu0 0.0
    %102 = vmatprep.subr.mxu0 0.0
    %103 = vmatpush1.msra.mxu0 0.0
    %104 = vmatprep.subr.mxu0 0.0
    %105 = vmatpush1.msra.mxu0 0.0
    %106 = vmatprep.subr.mxu0 0.0
    %107 = vmatpush1.msra.mxu0 0.0
    %108 = vmatprep.subr.mxu0 0.0
    %109 = vmatpush1.msra.mxu0 0.0
    %110 = vmatprep.subr.mxu0 0.0
    %111 = vmatpush1.msra.mxu0 0.0
    %112 = vmatprep.subr.mxu0 0.0
    %113 = vmatpush1.msra.mxu0 0.0
    %114 = vmatprep.subr.mxu0 0.0
    %115 = vmatpush1.msra.mxu0 0.0
    %116 = vmatprep.subr.mxu0 0.0
    %117 = vmatpush1.msra.mxu0 0.0
    %118 = vmatprep.subr.mxu0 0.0
    %119 = vmatpush1.msra.mxu0 0.0
    %120 = vmatprep.subr.mxu0 0.0
    %121 = vmatpush1.msra.mxu0 0.0
    %122 = vmatprep.subr.mxu0 0.0
    %123 = vmatpush1.msra.mxu0 0.0
    %124 = vmatprep.subr.mxu0 0.0
    %125 = vmatpush1.msra.mxu0 0.0
    %126 = vmatprep.subr.mxu0 0.0
    %127 = vmatpush1.msra.mxu0 0.0
    %128 = vmatprep.subr.mxu0 0.0
    %129 = vmatpush1.msra.mxu0 0.0
    %130 = vmatprep.subr.mxu0 0.0
    %131 = vmatpush1.msra.mxu0 0.0
    %132 = vmatprep.subr.mxu0 0.0
    %133 = vmatpush1.msra.mxu0 0.0
    %134 = vmatprep.subr.mxu0 0.0
    %135 = vmatpush1.msra.mxu0 0.0
    %136 = vmatprep.subr.mxu0 0.0
    %137 = vmatpush1.msra.mxu0 0.0
    %138 = vmatprep.subr.mxu0 0.0
    %139 = vmatpush1.msra.mxu0 0.0
    %140 = vmatprep.subr.mxu0 0.0
    %141 = vmatpush1.msra.mxu0 0.0
    %142 = vmatprep.subr.mxu0 0.0
    %143 = vmatpush1.msra.mxu0 0.0
    %144 = vmatprep.subr.mxu0 0.0
    %145 = vmatpush1.msra.mxu0 0.0
    %146 = vmatprep.subr.mxu0 0.0
    %147 = vmatpush1.msra.mxu0 0.0
    %148 = vmatprep.subr.mxu0 0.0
    %149 = vmatpush1.msra.mxu0 0.0
    %150 = vmatprep.subr.mxu0 0.0
    %151 = vmatpush1.msra.mxu0 0.0
    %152 = vmatprep.subr.mxu0 0.0
    %153 = vmatpush1.msra.mxu0 0.0
    %154 = vmatprep.subr.mxu0 0.0
    %155 = vmatpush1.msra.mxu0 0.0
    %156 = vmatprep.subr.mxu0 0.0
    %157 = vmatpush1.msra.mxu0 0.0
    %158 = vmatprep.subr.mxu0 0.0
    %159 = vmatpush1.msra.mxu0 0.0
    %160 = vmatprep.mubr.f32.mxu0 0.0
    %161 = vmatmul.mubr.f32.gmra.mrb[0].mxu0 %v91
    %v162 = vpop.f32.mrb[0].mxu0
    %v163 = vadd.f32 %v87, %v162
    %v164 = vpop.f32.mrb[0].mxu0
    %165 = vmatprep.mubr.f32.mxu0 0.0
    %166 = vmatmul.mubr.f32.gmra.mrb[0].mxu0 %v94
    %v167 = vpop.f32.mrb[0].mxu0
    %v168 = vadd.f32 %v87, %v167
    %v169 = vpop.f32.mrb[0].mxu0
    %170 = vdwg.mxu0
    %v171 = vld [vmem:[#allocation2] sm:$0xff]
    %v172 = vld [vmem:[#allocation7] sm:$0xff]
    %v173 = vld [vmem:[#allocation7 + $0x8] sm:$0xff]
    %v174 = vld [vmem:[#allocation7 + $0x10] sm:$0xff]
    %v175 = vld [vmem:[#allocation7 + $0x18] sm:$0xff]
    %v176 = vld [vmem:[#allocation7 + $0x20] sm:$0xff]
    %v177 = vld [vmem:[#allocation7 + $0x28] sm:$0xff]
    %v178 = vld [vmem:[#allocation7 + $0x30] sm:$0xff]
    %v179 = vld [vmem:[#allocation7 + $0x38] sm:$0xff]
    %v180 = vld [vmem:[#allocation7 + $0x40] sm:$0xff]
    %v181 = vld [vmem:[#allocation7 + $0x48] sm:$0xff]
    %v182 = vld [vmem:[#allocation7 + $0x50] sm:$0xff]
    %v183 = vld [vmem:[#allocation7 + $0x58] sm:$0xff]
    %v184 = vld [vmem:[#allocation7 + $0x60] sm:$0xff]
    %v185 = vld [vmem:[#allocation7 + $0x68] sm:$0xff]
    %v186 = vld [vmem:[#allocation7 + $0x70] sm:$0xff]
    %v187 = vld [vmem:[#allocation7 + $0x78] sm:$0xff]
    %v188 = vld [vmem:[%s5] sm:$0x1]
    %v190 = vlaneseq
    %v191 = vshrl.u32 %v190, 7
    %v192 = vsub.s32 0, %v191
    %v193 = vrot.slane %v188, %v192
    %195 = vmatprep.subr.mxu0 0.0
    %196 = vmatpush1.msra.mxu0 %v172
    %197 = vmatprep.subr.mxu0 0.0
    %198 = vmatpush1.msra.mxu0 %v173
    %199 = vmatprep.subr.mxu0 0.0
    %200 = vmatpush1.msra.mxu0 %v174
    %201 = vmatprep.subr.mxu0 0.0
    %202 = vmatpush1.msra.mxu0 %v175
    %203 = vmatprep.subr.mxu0 0.0
    %204 = vmatpush1.msra.mxu0 %v176
    %205 = vmatprep.subr.mxu0 0.0
    %206 = vmatpush1.msra.mxu0 %v177
    %207 = vmatprep.subr.mxu0 0.0
    %208 = vmatpush1.msra.mxu0 %v178
    %209 = vmatprep.subr.mxu0 0.0
    %210 = vmatpush1.msra.mxu0 %v179
    %211 = vmatprep.subr.mxu0 0.0
    %212 = vmatpush1.msra.mxu0 %v180
    %213 = vmatprep.subr.mxu0 0.0
    %214 = vmatpush1.msra.mxu0 %v181
    %215 = vmatprep.subr.mxu0 0.0
    %216 = vmatpush1.msra.mxu0 %v182
    %217 = vmatprep.subr.mxu0 0.0
    %218 = vmatpush1.msra.mxu0 %v183
    %219 = vmatprep.subr.mxu0 0.0
    %220 = vmatpush1.msra.mxu0 %v184
    %221 = vmatprep.subr.mxu0 0.0
    %222 = vmatpush1.msra.mxu0 %v185
    %223 = vmatprep.subr.mxu0 0.0
    %224 = vmatpush1.msra.mxu0 %v186
    %225 = vmatprep.subr.mxu0 0.0
    %226 = vmatpush1.msra.mxu0 %v187
    %227 = vmatprep.subr.mxu0 0.0
    %228 = vmatpush1.msra.mxu0 0.0
    %229 = vmatprep.subr.mxu0 0.0
    %230 = vmatpush1.msra.mxu0 0.0
    %231 = vmatprep.subr.mxu0 0.0
    %232 = vmatpush1.msra.mxu0 0.0
    %233 = vmatprep.subr.mxu0 0.0
    %234 = vmatpush1.msra.mxu0 0.0
    %235 = vmatprep.subr.mxu0 0.0
    %236 = vmatpush1.msra.mxu0 0.0
    %237 = vmatprep.subr.mxu0 0.0
    %238 = vmatpush1.msra.mxu0 0.0
    %239 = vmatprep.subr.mxu0 0.0
    %240 = vmatpush1.msra.mxu0 0.0
    %241 = vmatprep.subr.mxu0 0.0
    %242 = vmatpush1.msra.mxu0 0.0
    %243 = vmatprep.subr.mxu0 0.0
    %244 = vmatpush1.msra.mxu0 0.0
    %245 = vmatprep.subr.mxu0 0.0
    %246 = vmatpush1.msra.mxu0 0.0
    %247 = vmatprep.subr.mxu0 0.0
    %248 = vmatpush1.msra.mxu0 0.0
    %249 = vmatprep.subr.mxu0 0.0
    %250 = vmatpush1.msra.mxu0 0.0
    %251 = vmatprep.subr.mxu0 0.0
    %252 = vmatpush1.msra.mxu0 0.0
    %253 = vmatprep.subr.mxu0 0.0
    %254 = vmatpush1.msra.mxu0 0.0
    %255 = vmatprep.subr.mxu0 0.0
    %256 = vmatpush1.msra.mxu0 0.0
    %257 = vmatprep.subr.mxu0 0.0
    %258 = vmatpush1.msra.mxu0 0.0
    %259 = vmatprep.mubr.f32.mxu0 0.0
    %260 = vmatmul.mubr.f32.gmra.mrb[0].mxu0 %v171
    %v261 = vpop.f32.mrb[0].mxu0
    %v262 = vadd.f32 %v193, %v261
    %v263 = vpop.f32.mrb[0].mxu0
    %264 = vdwg.mxu0
    %v265 = vld [vmem:[%s6] sm:$0xff]
    %v266 = vld [vmem:[%s6 + $0x8] sm:$0xff]
    %v267 = vld [vmem:[%s7] sm:$0xff]
    %v268 = vld [vmem:[%s7 + $0x8] sm:$0xff]
    %vm269 = vcmask 64512
    %v271 = vsel %vm269, %v267, 0
    %v274 = vsel %vm269, %v268, 0
    %276 = vmatprep.subr.mxu0 0.0
    %277 = vmatpush1.msra.mxu0 %v262
    %278 = vmatprep.subr.mxu0 0.0
    %279 = vmatpush1.msra.mxu0 0.0
    %280 = vmatprep.subr.mxu0 0.0
    %281 = vmatpush1.msra.mxu0 0.0
    %282 = vmatprep.subr.mxu0 0.0
    %283 = vmatpush1.msra.mxu0 0.0
    %284 = vmatprep.subr.mxu0 0.0
    %285 = vmatpush1.msra.mxu0 0.0
    %286 = vmatprep.subr.mxu0 0.0
    %287 = vmatpush1.msra.mxu0 0.0
    %288 = vmatprep.subr.mxu0 0.0
    %289 = vmatpush1.msra.mxu0 0.0
    %290 = vmatprep.subr.mxu0 0.0
    %291 = vmatpush1.msra.mxu0 0.0
    %292 = vmatprep.subr.mxu0 0.0
    %293 = vmatpush1.msra.mxu0 0.0
    %294 = vmatprep.subr.mxu0 0.0
    %295 = vmatpush1.msra.mxu0 0.0
    %296 = vmatprep.subr.mxu0 0.0
    %297 = vmatpush1.msra.mxu0 0.0
    %298 = vmatprep.subr.mxu0 0.0
    %299 = vmatpush1.msra.mxu0 0.0
    %300 = vmatprep.subr.mxu0 0.0
    %301 = vmatpush1.msra.mxu0 0.0
    %302 = vmatprep.subr.mxu0 0.0
    %303 = vmatpush1.msra.mxu0 0.0
    %304 = vmatprep.subr.mxu0 0.0
    %305 = vmatpush1.msra.mxu0 0.0
    %306 = vmatprep.subr.mxu0 0.0
    %307 = vmatpush1.msra.mxu0 0.0
    %308 = vmatprep.subr.mxu0 0.0
    %309 = vmatpush1.msra.mxu0 0.0
    %310 = vmatprep.subr.mxu0 0.0
    %311 = vmatpush1.msra.mxu0 0.0
    %312 = vmatprep.subr.mxu0 0.0
    %313 = vmatpush1.msra.mxu0 0.0
    %314 = vmatprep.subr.mxu0 0.0
    %315 = vmatpush1.msra.mxu0 0.0
    %316 = vmatprep.subr.mxu0 0.0
    %317 = vmatpush1.msra.mxu0 0.0
    %318 = vmatprep.subr.mxu0 0.0
    %319 = vmatpush1.msra.mxu0 0.0
    %320 = vmatprep.subr.mxu0 0.0
    %321 = vmatpush1.msra.mxu0 0.0
    %322 = vmatprep.subr.mxu0 0.0
    %323 = vmatpush1.msra.mxu0 0.0
    %324 = vmatprep.subr.mxu0 0.0
    %325 = vmatpush1.msra.mxu0 0.0
    %326 = vmatprep.subr.mxu0 0.0
    %327 = vmatpush1.msra.mxu0 0.0
    %328 = vmatprep.subr.mxu0 0.0
    %329 = vmatpush1.msra.mxu0 0.0
    %330 = vmatprep.subr.mxu0 0.0
    %331 = vmatpush1.msra.mxu0 0.0
    %332 = vmatprep.subr.mxu0 0.0
    %333 = vmatpush1.msra.mxu0 0.0
    %334 = vmatprep.subr.mxu0 0.0
    %335 = vmatpush1.msra.mxu0 0.0
    %336 = vmatprep.subr.mxu0 0.0
    %337 = vmatpush1.msra.mxu0 0.0
    %338 = vmatprep.subr.mxu0 0.0
    %339 = vmatpush1.msra.mxu0 0.0
    %340 = vmatprep.mubr.f32.mxu0 0.0
    %341 = vmatmul.mubr.f32.gmra.mrb[0].mxu0 %v271
    %v342 = vpop.f32.mrb[0].mxu0
    %v343 = vadd.f32 0.0, %v342
    %v344 = vpop.f32.mrb[0].mxu0
    %345 = vmatprep.mubr.f32.mxu0 0.0
    %346 = vmatmul.mubr.f32.gmra.mrb[0].mxu0 %v274
    %v347 = vpop.f32.mrb[0].mxu0
    %v348 = vadd.f32 0.0, %v347
    %v349 = vpop.f32.mrb[0].mxu0
    %350 = vdwg.mxu0
    %v352 = vsel %vm89, %v265, 0
    %v355 = vsel %vm89, %v266, 0
    %357 = vmatprep.subr.mxu0 0.0
    %358 = vmatpush1.msra.mxu0 %v163
    %359 = vmatprep.subr.mxu0 0.0
    %360 = vmatpush1.msra.mxu0 %v168
    %361 = vmatprep.subr.mxu0 0.0
    %362 = vmatpush1.msra.mxu0 0.0
    %363 = vmatprep.subr.mxu0 0.0
    %364 = vmatpush1.msra.mxu0 0.0
    %365 = vmatprep.subr.mxu0 0.0
    %366 = vmatpush1.msra.mxu0 0.0
    %367 = vmatprep.subr.mxu0 0.0
    %368 = vmatpush1.msra.mxu0 0.0
    %369 = vmatprep.subr.mxu0 0.0
    %370 = vmatpush1.msra.mxu0 0.0
    %371 = vmatprep.subr.mxu0 0.0
    %372 = vmatpush1.msra.mxu0 0.0
    %373 = vmatprep.subr.mxu0 0.0
    %374 = vmatpush1.msra.mxu0 0.0
    %375 = vmatprep.subr.mxu0 0.0
    %376 = vmatpush1.msra.mxu0 0.0
    %377 = vmatprep.subr.mxu0 0.0
    %378 = vmatpush1.msra.mxu0 0.0
    %379 = vmatprep.subr.mxu0 0.0
    %380 = vmatpush1.msra.mxu0 0.0
    %381 = vmatprep.subr.mxu0 0.0
    %382 = vmatpush1.msra.mxu0 0.0
    %383 = vmatprep.subr.mxu0 0.0
    %384 = vmatpush1.msra.mxu0 0.0
    %385 = vmatprep.subr.mxu0 0.0
    %386 = vmatpush1.msra.mxu0 0.0
    %387 = vmatprep.subr.mxu0 0.0
    %388 = vmatpush1.msra.mxu0 0.0
    %389 = vmatprep.subr.mxu0 0.0
    %390 = vmatpush1.msra.mxu0 0.0
    %391 = vmatprep.subr.mxu0 0.0
    %392 = vmatpush1.msra.mxu0 0.0
    %393 = vmatprep.subr.mxu0 0.0
    %394 = vmatpush1.msra.mxu0 0.0
    %395 = vmatprep.subr.mxu0 0.0
    %396 = vmatpush1.msra.mxu0 0.0
    %397 = vmatprep.subr.mxu0 0.0
    %398 = vmatpush1.msra.mxu0 0.0
    %399 = vmatprep.subr.mxu0 0.0
    %400 = vmatpush1.msra.mxu0 0.0
    %401 = vmatprep.subr.mxu0 0.0
    %402 = vmatpush1.msra.mxu0 0.0
    %403 = vmatprep.subr.mxu0 0.0
    %404 = vmatpush1.msra.mxu0 0.0
    %405 = vmatprep.subr.mxu0 0.0
    %406 = vmatpush1.msra.mxu0 0.0
    %407 = vmatprep.subr.mxu0 0.0
    %408 = vmatpush1.msra.mxu0 0.0
    %409 = vmatprep.subr.mxu0 0.0
    %410 = vmatpush1.msra.mxu0 0.0
    %411 = vmatprep.subr.mxu0 0.0
    %412 = vmatpush1.msra.mxu0 0.0
    %413 = vmatprep.subr.mxu0 0.0
    %414 = vmatpush1.msra.mxu0 0.0
    %415 = vmatprep.subr.mxu0 0.0
    %416 = vmatpush1.msra.mxu0 0.0
    %417 = vmatprep.subr.mxu0 0.0
    %418 = vmatpush1.msra.mxu0 0.0
    %419 = vmatprep.subr.mxu0 0.0
    %420 = vmatpush1.msra.mxu0 0.0
    %421 = vmatprep.mubr.f32.mxu0 0.0
    %422 = vmatmul.mubr.f32.gmra.mrb[0].mxu0 %v352
    %v423 = vpop.f32.mrb[0].mxu0
    %v424 = vadd.f32 %v343, %v423
    %v425 = vpop.f32.mrb[0].mxu0
    %426 = vmatprep.mubr.f32.mxu0 0.0
    %427 = vmatmul.mubr.f32.gmra.mrb[0].mxu0 %v355
    %v428 = vpop.f32.mrb[0].mxu0
    %v429 = vadd.f32 %v348, %v428
    %v430 = vpop.f32.mrb[0].mxu0
    %431 = vdwg.mxu0
    %v432 = vld [vmem:[%s8] sm:$0xff]
    %v433 = vld [vmem:[%s9] sm:$0xff]
    %v435 = vsel %vm269, %v433, 0
    %437 = vmatprep.subr.mxu0 0.0
    %438 = vmatpush1.msra.mxu0 %v262
    %439 = vmatprep.subr.mxu0 0.0
    %440 = vmatpush1.msra.mxu0 0.0
    %441 = vmatprep.subr.mxu0 0.0
    %442 = vmatpush1.msra.mxu0 0.0
    %443 = vmatprep.subr.mxu0 0.0
    %444 = vmatpush1.msra.mxu0 0.0
    %445 = vmatprep.subr.mxu0 0.0
    %446 = vmatpush1.msra.mxu0 0.0
    %447 = vmatprep.subr.mxu0 0.0
    %448 = vmatpush1.msra.mxu0 0.0
    %449 = vmatprep.subr.mxu0 0.0
    %450 = vmatpush1.msra.mxu0 0.0
    %451 = vmatprep.subr.mxu0 0.0
    %452 = vmatpush1.msra.mxu0 0.0
    %453 = vmatprep.subr.mxu0 0.0
    %454 = vmatpush1.msra.mxu0 0.0
    %455 = vmatprep.subr.mxu0 0.0
    %456 = vmatpush1.msra.mxu0 0.0
    %457 = vmatprep.subr.mxu0 0.0
    %458 = vmatpush1.msra.mxu0 0.0
    %459 = vmatprep.subr.mxu0 0.0
    %460 = vmatpush1.msra.mxu0 0.0
    %461 = vmatprep.subr.mxu0 0.0
    %462 = vmatpush1.msra.mxu0 0.0
    %463 = vmatprep.subr.mxu0 0.0
    %464 = vmatpush1.msra.mxu0 0.0
    %465 = vmatprep.subr.mxu0 0.0
    %466 = vmatpush1.msra.mxu0 0.0
    %467 = vmatprep.subr.mxu0 0.0
    %468 = vmatpush1.msra.mxu0 0.0
    %469 = vmatprep.subr.mxu0 0.0
    %470 = vmatpush1.msra.mxu0 0.0
    %471 = vmatprep.subr.mxu0 0.0
    %472 = vmatpush1.msra.mxu0 0.0
    %473 = vmatprep.subr.mxu0 0.0
    %474 = vmatpush1.msra.mxu0 0.0
    %475 = vmatprep.subr.mxu0 0.0
    %476 = vmatpush1.msra.mxu0 0.0
    %477 = vmatprep.subr.mxu0 0.0
    %478 = vmatpush1.msra.mxu0 0.0
    %479 = vmatprep.subr.mxu0 0.0
    %480 = vmatpush1.msra.mxu0 0.0
    %481 = vmatprep.subr.mxu0 0.0
    %482 = vmatpush1.msra.mxu0 0.0
    %483 = vmatprep.subr.mxu0 0.0
    %484 = vmatpush1.msra.mxu0 0.0
    %485 = vmatprep.subr.mxu0 0.0
    %486 = vmatpush1.msra.mxu0 0.0
    %487 = vmatprep.subr.mxu0 0.0
    %488 = vmatpush1.msra.mxu0 0.0
    %489 = vmatprep.subr.mxu0 0.0
    %490 = vmatpush1.msra.mxu0 0.0
    %491 = vmatprep.subr.mxu0 0.0
    %492 = vmatpush1.msra.mxu0 0.0
    %493 = vmatprep.subr.mxu0 0.0
    %494 = vmatpush1.msra.mxu0 0.0
    %495 = vmatprep.subr.mxu0 0.0
    %496 = vmatpush1.msra.mxu0 0.0
    %497 = vmatprep.subr.mxu0 0.0
    %498 = vmatpush1.msra.mxu0 0.0
    %499 = vmatprep.subr.mxu0 0.0
    %500 = vmatpush1.msra.mxu0 0.0
    %501 = vmatprep.mubr.f32.mxu0 0.0
    %502 = vmatmul.mubr.f32.gmra.mrb[0].mxu0 %v435
    %v503 = vpop.f32.mrb[0].mxu0
    %v504 = vadd.f32 0.0, %v503
    %v505 = vpop.f32.mrb[0].mxu0
    %506 = vdwg.mxu0
    %v508 = vsel %vm89, %v432, 0
    %510 = vmatprep.subr.mxu0 0.0
    %511 = vmatpush1.msra.mxu0 %v163
    %512 = vmatprep.subr.mxu0 0.0
    %513 = vmatpush1.msra.mxu0 %v168
    %514 = vmatprep.subr.mxu0 0.0
    %515 = vmatpush1.msra.mxu0 0.0
    %516 = vmatprep.subr.mxu0 0.0
    %517 = vmatpush1.msra.mxu0 0.0
    %518 = vmatprep.subr.mxu0 0.0
    %519 = vmatpush1.msra.mxu0 0.0
    %520 = vmatprep.subr.mxu0 0.0
    %521 = vmatpush1.msra.mxu0 0.0
    %522 = vmatprep.subr.mxu0 0.0
    %523 = vmatpush1.msra.mxu0 0.0
    %524 = vmatprep.subr.mxu0 0.0
    %525 = vmatpush1.msra.mxu0 0.0
    %526 = vmatprep.subr.mxu0 0.0
    %527 = vmatpush1.msra.mxu0 0.0
    %528 = vmatprep.subr.mxu0 0.0
    %529 = vmatpush1.msra.mxu0 0.0
    %530 = vmatprep.subr.mxu0 0.0
    %531 = vmatpush1.msra.mxu0 0.0
    %532 = vmatprep.subr.mxu0 0.0
    %533 = vmatpush1.msra.mxu0 0.0
    %534 = vmatprep.subr.mxu0 0.0
    %535 = vmatpush1.msra.mxu0 0.0
    %536 = vmatprep.subr.mxu0 0.0
    %537 = vmatpush1.msra.mxu0 0.0
    %538 = vmatprep.subr.mxu0 0.0
    %539 = vmatpush1.msra.mxu0 0.0
    %540 = vmatprep.subr.mxu0 0.0
    %541 = vmatpush1.msra.mxu0 0.0
    %542 = vmatprep.subr.mxu0 0.0
    %543 = vmatpush1.msra.mxu0 0.0
    %544 = vmatprep.subr.mxu0 0.0
    %545 = vmatpush1.msra.mxu0 0.0
    %546 = vmatprep.subr.mxu0 0.0
    %547 = vmatpush1.msra.mxu0 0.0
    %548 = vmatprep.subr.mxu0 0.0
    %549 = vmatpush1.msra.mxu0 0.0
    %550 = vmatprep.subr.mxu0 0.0
    %551 = vmatpush1.msra.mxu0 0.0
    %552 = vmatprep.subr.mxu0 0.0
    %553 = vmatpush1.msra.mxu0 0.0
    %554 = vmatprep.subr.mxu0 0.0
    %555 = vmatpush1.msra.mxu0 0.0
    %556 = vmatprep.subr.mxu0 0.0
    %557 = vmatpush1.msra.mxu0 0.0
    %558 = vmatprep.subr.mxu0 0.0
    %559 = vmatpush1.msra.mxu0 0.0
    %560 = vmatprep.subr.mxu0 0.0
    %561 = vmatpush1.msra.mxu0 0.0
    %562 = vmatprep.subr.mxu0 0.0
    %563 = vmatpush1.msra.mxu0 0.0
    %564 = vmatprep.subr.mxu0 0.0
    %565 = vmatpush1.msra.mxu0 0.0
    %566 = vmatprep.subr.mxu0 0.0
    %567 = vmatpush1.msra.mxu0 0.0
    %568 = vmatprep.subr.mxu0 0.0
    %569 = vmatpush1.msra.mxu0 0.0
    %570 = vmatprep.subr.mxu0 0.0
    %571 = vmatpush1.msra.mxu0 0.0
    %572 = vmatprep.subr.mxu0 0.0
    %573 = vmatpush1.msra.mxu0 0.0
    %574 = vmatprep.mubr.f32.mxu0 0.0
    %575 = vmatmul.mubr.f32.gmra.mrb[0].mxu0 %v508
    %v576 = vpop.f32.mrb[0].mxu0
    %v577 = vadd.f32 %v504, %v576
    %v578 = vpop.f32.mrb[0].mxu0
    %579 = vdwg.mxu0
    %v580 = vadd.f32 %v163, %v424
    %v581 = vadd.f32 %v168, %v429
    %v582 = vmul.f32 %v580, 0.5
    %v583 = vmul.f32 %v581, 0.5
    %584 = vst [vmem:[#allocation8] sm:$0xff] %v582
    %585 = vst [vmem:[#allocation8 + $0x8] sm:$0xff] %v583
    %v586 = vadd.f32 %v262, %v577
    %v587 = vmul.f32 %v586, 0.5
    %588 = vst [vmem:[#allocation9] sm:$0xff] %v587
    // Predicated region
    $region54: #{tpu_custom_call.1} parent=1 // pred_check
      _
    $region55: #{tpu_custom_call.1} parent=1 // pred_check_branch
      %590 = sbr.rel (0) target = $region57
    $region56: #{tpu_custom_call.1} parent=1 // pred_region
      %s592 = ssub.s32 256, 256
      %593 = vsyncadd [#allocation4], %s592
      %s594 = sshll.u32 [#allocation8], 4
      %s595 = int_to_ptr.vmem [resolvable:$true] %s594
      %600 = dma.vmem_to_hbm [thread:$0]  %s595, 256, %s10, [#allocation4], 128, 128, 8
    $region57: #{tpu_custom_call.1} parent=1 // pred_fallthru
      _
    // Predicated region
    $region58: #{tpu_custom_call.1} parent=1 // pred_check
      _
    $region59: #{tpu_custom_call.1} parent=1 // pred_check_branch
      %602 = sbr.rel (0) target = $region61
    $region60: #{tpu_custom_call.1} parent=1 // pred_region
      %s604 = ssub.s32 128, 128
      %605 = vsyncadd [#allocation10], %s604
      %s607 = sshll.u32 [#allocation9], 4
      %s608 = int_to_ptr.vmem [resolvable:$true] %s607
      %610 = dma.vmem_to_hbm [thread:$0]  %s608, 128, %s11, [#allocation10]
    $region61: #{tpu_custom_call.1} parent=1 // pred_fallthru
      _
    // Predicated region
    $region62: #{tpu_custom_call.1} parent=1 // pred_check
      _
    $region63: #{tpu_custom_call.1} parent=1 // pred_check_branch
      %612 = sbr.rel (0) target = $region65
    $region64: #{tpu_custom_call.1} parent=1 // pred_region
      %613 = dma.done [#allocation4], 256
    $region65: #{tpu_custom_call.1} parent=1 // pred_fallthru
      _
    // Predicated region
    $region66: #{tpu_custom_call.1} parent=1 // pred_check
      _
    $region67: #{tpu_custom_call.1} parent=1 // pred_check_branch
      %615 = sbr.rel (0) target = $region69
    $region68: #{tpu_custom_call.1} parent=1 // pred_region
      %616 = dma.done [#allocation10], 128
    $region69: #{tpu_custom_call.1} parent=1 // pred_fallthru
      _
    %617 = vsyncpa [#allocation3], 1
    %618 = vsyncpa [#allocation6], 1
    %619 = vsyncpa [#allocation4], 1
    %620 = vsyncpa [#allocation10], 1

</llo_original>
